<compile_context>
chip_gen: v5e
topology: v5e:2x2
jax: 0.10.0
libtpu: 0.0.40
codegen_flags: <defaults>
</compile_context>

<pallas_src>
import jax
import jax.numpy as jnp
from jax.experimental import pallas as pl
from jax.experimental.pallas import tpu as pltpu


def _round_up(x, m):
    return (x + m - 1) // m * m


def mlp_readout_kernel(x_ref,
                       w0_ref, b0_ref,
                       w1_ref, b1_ref,
                       w2_ref, b2_ref,
                       w3_ref, b3_ref,
                       o_ref):
    y = x_ref[...]

    # layer 0: Linear(D -> D/2) + ReLU
    y = jnp.dot(y, w0_ref[...], preferred_element_type=jnp.float32) + b0_ref[...]
    y = jnp.maximum(y, 0.0)

    # layer 1: Linear(D/2 -> D/4) + ReLU
    y = jnp.dot(y, w1_ref[...], preferred_element_type=jnp.float32) + b1_ref[...]
    y = jnp.maximum(y, 0.0)

    # layer 2: Linear(D/4 -> D/8) + ReLU
    y = jnp.dot(y, w2_ref[...], preferred_element_type=jnp.float32) + b2_ref[...]
    y = jnp.maximum(y, 0.0)

    # final layer: Linear(D/8 -> out_padded), no activation (padding lanes are 0)
    y = jnp.dot(y, w3_ref[...], preferred_element_type=jnp.float32) + b3_ref[...]

    o_ref[...] = y.astype(o_ref.dtype)


def mlp_readout(x, weights, biases, *, tile_m=512, compute_dtype=jnp.float32):
    """Fused MLPReadout forward.

    x:          (N, input_dim) float32
    weights[i]: (in_i, out_i) float32   (already transposed from PyTorch (out, in))
    biases[i]:  (1, out_i)    float32
    tile_m:     batch rows per grid step (large tiles amortize per-step overhead)
    compute_dtype: jnp.float32 (default) or jnp.bfloat16 for v6e/v7x MXU speed;
                   accumulation is always f32 via preferred_element_type.
    """
    N, D = x.shape
    out_dim = weights[-1].shape[1]
    out_dtype = x.dtype

    # --- lane-dense final layer: pad the output feature dim to a 128 multiple ---
    out_pad = _round_up(out_dim, 128)
    w_last, b_last = weights[-1], biases[-1]
    if out_pad != out_dim:
        w_last = jnp.pad(w_last, ((0, 0), (0, out_pad - out_dim)))
        b_last = jnp.pad(b_last, ((0, 0), (0, out_pad - out_dim)))
    ws = list(weights[:-1]) + [w_last]
    bs = list(biases[:-1]) + [b_last]

    # --- optional low-precision operands (weights & activations), f32 accumulate ---
    if compute_dtype != jnp.float32:
        x = x.astype(compute_dtype)
        ws = [w.astype(compute_dtype) for w in ws]
        # biases stay f32; they're added to the f32 accumulator.

    # --- batch tiling: big tiles, sublane-aligned, ragged N handled by padding ---
    tile_m = max(8, min(int(tile_m), _round_up(N, 8)))
    tile_m = _round_up(tile_m, 8)
    N_pad = _round_up(N, tile_m)
    x_p = jnp.pad(x, ((0, N_pad - N), (0, 0))) if N_pad != N else x

    grid = (N_pad // tile_m,)

    in_specs = [pl.BlockSpec((tile_m, D), lambda i: (i, 0))]
    for w, b in zip(ws, bs):
        # Tiny weights/biases stay fully resident in VMEM for every grid step.
        in_specs.append(pl.BlockSpec(w.shape, lambda i: (0, 0)))
        in_specs.append(pl.BlockSpec(b.shape, lambda i: (0, 0)))

    out_spec = pl.BlockSpec((tile_m, out_pad), lambda i: (i, 0))

    flat_params = []
    for w, b in zip(ws, bs):
        flat_params.extend([w, b])

    out = pl.pallas_call(
        mlp_readout_kernel,
        out_shape=jax.ShapeDtypeStruct((N_pad, out_pad), out_dtype),
        grid_spec=pl.GridSpec(
            grid=grid,
            in_specs=in_specs,
            out_specs=out_spec,
        ),
        compiler_params=pltpu.CompilerParams(
            dimension_semantics=("parallel",)),
    )(x_p, *flat_params)

    # Slice away the batch padding and the lane padding of the last layer.
    return out[:N, :out_dim]


def init_mlp_readout_params(key, input_dim, output_dim, L=3):
    """Deterministic init mimicking PyTorch nn.Linear default (U(-k, k), k=1/sqrt(in))."""
    dims = [input_dim // (2 ** l) for l in range(L + 1)] + [output_dim]
    weights, biases = [], []
    for l in range(L + 1):
        d_in, d_out = dims[l], dims[l + 1]
        key, kw, kb = jax.random.split(key, 3)
        bound = 1.0 / jnp.sqrt(jnp.float32(d_in))
        # stored as (in, out) so kernel does x @ W
        w = jax.random.uniform(kw, (d_in, d_out), jnp.float32, -bound, bound)
        b = jax.random.uniform(kb, (1, d_out), jnp.float32, -bound, bound)
        weights.append(w)
        biases.append(b)
    return weights, biases


def mlp_readout_ref(x, weights, biases, L=3):
    y = x
    for l in range(L):
        y = jnp.maximum(y @ weights[l] + biases[l], 0.0)
    y = y @ weights[L] + biases[L]
    return y


if __name__ == "__main__":
    key = jax.random.PRNGKey(0)

    input_dim = 128   # input_dim // 2^3 = 16, clean sublane multiple
    output_dim = 8
    L = 3
    N = 20            # deliberately ragged batch -> exercises wrapper padding

    key, kx = jax.random.split(key)
    x = jax.random.normal(kx, (N, input_dim), jnp.float32)

    weights, biases = init_mlp_readout_params(key, input_dim, output_dim, L=L)

    # tile_m=512 is clamped to the (padded) small demo batch; for real workloads
    # with N in the thousands it stays at 512+ rows per grid step.
    out = mlp_readout(x, weights, biases, tile_m=512)
    out = jax.block_until_ready(out)

    ref = mlp_readout_ref(x, weights, biases, L=L)
    assert out.shape == (N, output_dim)
    assert jnp.allclose(out, ref, atol=1e-4, rtol=1e-4), "mismatch vs pure-JAX reference"

    print("KERNEL_OK")
</pallas_src>

<mosaic_0001>
module attributes {stable_mosaic.version = 11 : i64} {
  func.func @mlp_readout_kernel(%arg0: i32, %arg1: memref<24x128xf32, #tpu.memory_space<vmem>>, %arg2: memref<128x64xf32, #tpu.memory_space<vmem>>, %arg3: memref<1x64xf32, #tpu.memory_space<vmem>>, %arg4: memref<64x32xf32, #tpu.memory_space<vmem>>, %arg5: memref<1x32xf32, #tpu.memory_space<vmem>>, %arg6: memref<32x16xf32, #tpu.memory_space<vmem>>, %arg7: memref<1x16xf32, #tpu.memory_space<vmem>>, %arg8: memref<16x128xf32, #tpu.memory_space<vmem>>, %arg9: memref<1x128xf32, #tpu.memory_space<vmem>>, %arg10: memref<24x128xf32, #tpu.memory_space<vmem>>) attributes {dimension_semantics = [#tpu.dimension_semantics<parallel>], iteration_bounds = array<i64: 1>, scalar_prefetch = 0 : i64, scratch_operands = 0 : i64, tpu.core_type = #tpu.core_type<tc>, window_params = [{transform_indices = @transform_0, window_bounds = array<i64: 24, 128>}, {pipeline_mode = #tpu.pipeline_mode<synchronous>, transform_indices = @transform_1, window_bounds = array<i64: 128, 64>}, {pipeline_mode = #tpu.pipeline_mode<synchronous>, transform_indices = @transform_2, window_bounds = array<i64: 1, 64>}, {pipeline_mode = #tpu.pipeline_mode<synchronous>, transform_indices = @transform_3, window_bounds = array<i64: 64, 32>}, {pipeline_mode = #tpu.pipeline_mode<synchronous>, transform_indices = @transform_4, window_bounds = array<i64: 1, 32>}, {pipeline_mode = #tpu.pipeline_mode<synchronous>, transform_indices = @transform_5, window_bounds = array<i64: 32, 16>}, {pipeline_mode = #tpu.pipeline_mode<synchronous>, transform_indices = @transform_6, window_bounds = array<i64: 1, 16>}, {pipeline_mode = #tpu.pipeline_mode<synchronous>, transform_indices = @transform_7, window_bounds = array<i64: 16, 128>}, {pipeline_mode = #tpu.pipeline_mode<synchronous>, transform_indices = @transform_8, window_bounds = array<i64: 1, 128>}, {transform_indices = @transform_9, window_bounds = array<i64: 24, 128>}]} {
    %c0 = arith.constant 0 : index
    %c0_0 = arith.constant 0 : index
    %0 = vector.load %arg1[%c0, %c0_0] : memref<24x128xf32, #tpu.memory_space<vmem>>, vector<24x128xf32>
    %c0_1 = arith.constant 0 : index
    %c0_2 = arith.constant 0 : index
    %1 = vector.load %arg2[%c0_1, %c0_2] : memref<128x64xf32, #tpu.memory_space<vmem>>, vector<128x64xf32>
    %cst = arith.constant dense<0.000000e+00> : vector<24x64xf32>
    %2 = tpu.matmul %0, %1, %cst {dimension_numbers = #tpu.dot_dimension_numbers<[1], [0], [0], [1], [0, 0, 1, 1], [], []>} : vector<24x128xf32>, vector<128x64xf32>, vector<24x64xf32> -> vector<24x64xf32>
    %c0_3 = arith.constant 0 : index
    %c0_4 = arith.constant 0 : index
    %3 = vector.load %arg3[%c0_3, %c0_4] : memref<1x64xf32, #tpu.memory_space<vmem>>, vector<1x64xf32>
    %4 = vector.broadcast %3 : vector<1x64xf32> to vector<24x64xf32>
    %5 = arith.addf %2, %4 : vector<24x64xf32>
    %cst_5 = arith.constant 0.000000e+00 : f32
    %6 = vector.broadcast %cst_5 : f32 to vector<24x64xf32>
    %7 = arith.maximumf %5, %6 : vector<24x64xf32>
    %c0_6 = arith.constant 0 : index
    %c0_7 = arith.constant 0 : index
    %8 = vector.load %arg4[%c0_6, %c0_7] : memref<64x32xf32, #tpu.memory_space<vmem>>, vector<64x32xf32>
    %cst_8 = arith.constant dense<0.000000e+00> : vector<24x32xf32>
    %9 = tpu.matmul %7, %8, %cst_8 {dimension_numbers = #tpu.dot_dimension_numbers<[1], [0], [0], [1], [0, 0, 1, 1], [], []>} : vector<24x64xf32>, vector<64x32xf32>, vector<24x32xf32> -> vector<24x32xf32>
    %c0_9 = arith.constant 0 : index
    %c0_10 = arith.constant 0 : index
    %10 = vector.load %arg5[%c0_9, %c0_10] : memref<1x32xf32, #tpu.memory_space<vmem>>, vector<1x32xf32>
    %11 = vector.broadcast %10 : vector<1x32xf32> to vector<24x32xf32>
    %12 = arith.addf %9, %11 : vector<24x32xf32>
    %cst_11 = arith.constant 0.000000e+00 : f32
    %13 = vector.broadcast %cst_11 : f32 to vector<24x32xf32>
    %14 = arith.maximumf %12, %13 : vector<24x32xf32>
    %c0_12 = arith.constant 0 : index
    %c0_13 = arith.constant 0 : index
    %15 = vector.load %arg6[%c0_12, %c0_13] : memref<32x16xf32, #tpu.memory_space<vmem>>, vector<32x16xf32>
    %cst_14 = arith.constant dense<0.000000e+00> : vector<24x16xf32>
    %16 = tpu.matmul %14, %15, %cst_14 {dimension_numbers = #tpu.dot_dimension_numbers<[1], [0], [0], [1], [0, 0, 1, 1], [], []>} : vector<24x32xf32>, vector<32x16xf32>, vector<24x16xf32> -> vector<24x16xf32>
    %c0_15 = arith.constant 0 : index
    %c0_16 = arith.constant 0 : index
    %17 = vector.load %arg7[%c0_15, %c0_16] : memref<1x16xf32, #tpu.memory_space<vmem>>, vector<1x16xf32>
    %18 = vector.broadcast %17 : vector<1x16xf32> to vector<24x16xf32>
    %19 = arith.addf %16, %18 : vector<24x16xf32>
    %cst_17 = arith.constant 0.000000e+00 : f32
    %20 = vector.broadcast %cst_17 : f32 to vector<24x16xf32>
    %21 = arith.maximumf %19, %20 : vector<24x16xf32>
    %c0_18 = arith.constant 0 : index
    %c0_19 = arith.constant 0 : index
    %22 = vector.load %arg8[%c0_18, %c0_19] : memref<16x128xf32, #tpu.memory_space<vmem>>, vector<16x128xf32>
    %cst_20 = arith.constant dense<0.000000e+00> : vector<24x128xf32>
    %23 = tpu.matmul %21, %22, %cst_20 {dimension_numbers = #tpu.dot_dimension_numbers<[1], [0], [0], [1], [0, 0, 1, 1], [], []>} : vector<24x16xf32>, vector<16x128xf32>, vector<24x128xf32> -> vector<24x128xf32>
    %c0_21 = arith.constant 0 : index
    %c0_22 = arith.constant 0 : index
    %24 = vector.load %arg9[%c0_21, %c0_22] : memref<1x128xf32, #tpu.memory_space<vmem>>, vector<1x128xf32>
    %25 = vector.broadcast %24 : vector<1x128xf32> to vector<24x128xf32>
    %26 = arith.addf %23, %25 : vector<24x128xf32>
    %c0_23 = arith.constant 0 : index
    %c0_24 = arith.constant 0 : index
    %27 = vector.load %arg10[%c0_23, %c0_24] : memref<24x128xf32, #tpu.memory_space<vmem>>, vector<24x128xf32>
    tpu.vector_store %arg10[%c0_23, %c0_24], %26 {strides = array<i32>} : memref<24x128xf32, #tpu.memory_space<vmem>>, vector<24x128xf32>,
    return
  }
  func.func @transform_0(%arg0: i32) -> (i32, i32) {
    %c0_i32 = arith.constant 0 : i32
    %c0_i32_0 = arith.constant 0 : i32
    return %arg0, %c0_i32 : i32, i32
  }
  func.func @transform_1(%arg0: i32) -> (i32, i32) {
    %c0_i32 = arith.constant 0 : i32
    %c0_i32_0 = arith.constant 0 : i32
    %c0_i32_1 = arith.constant 0 : i32
    return %c0_i32, %c0_i32_0 : i32, i32
  }
  func.func @transform_2(%arg0: i32) -> (i32, i32) {
    %c0_i32 = arith.constant 0 : i32
    %c0_i32_0 = arith.constant 0 : i32
    %c0_i32_1 = arith.constant 0 : i32
    return %c0_i32, %c0_i32_0 : i32, i32
  }
  func.func @transform_3(%arg0: i32) -> (i32, i32) {
    %c0_i32 = arith.constant 0 : i32
    %c0_i32_0 = arith.constant 0 : i32
    %c0_i32_1 = arith.constant 0 : i32
    return %c0_i32, %c0_i32_0 : i32, i32
  }
  func.func @transform_4(%arg0: i32) -> (i32, i32) {
    %c0_i32 = arith.constant 0 : i32
    %c0_i32_0 = arith.constant 0 : i32
    %c0_i32_1 = arith.constant 0 : i32
    return %c0_i32, %c0_i32_0 : i32, i32
  }
  func.func @transform_5(%arg0: i32) -> (i32, i32) {
    %c0_i32 = arith.constant 0 : i32
    %c0_i32_0 = arith.constant 0 : i32
    %c0_i32_1 = arith.constant 0 : i32
    return %c0_i32, %c0_i32_0 : i32, i32
  }
  func.func @transform_6(%arg0: i32) -> (i32, i32) {
    %c0_i32 = arith.constant 0 : i32
    %c0_i32_0 = arith.constant 0 : i32
    %c0_i32_1 = arith.constant 0 : i32
    return %c0_i32, %c0_i32_0 : i32, i32
  }
  func.func @transform_7(%arg0: i32) -> (i32, i32) {
    %c0_i32 = arith.constant 0 : i32
    %c0_i32_0 = arith.constant 0 : i32
    %c0_i32_1 = arith.constant 0 : i32
    return %c0_i32, %c0_i32_0 : i32, i32
  }
  func.func @transform_8(%arg0: i32) -> (i32, i32) {
    %c0_i32 = arith.constant 0 : i32
    %c0_i32_0 = arith.constant 0 : i32
    %c0_i32_1 = arith.constant 0 : i32
    return %c0_i32, %c0_i32_0 : i32, i32
  }
  func.func @transform_9(%arg0: i32) -> (i32, i32) {
    %c0_i32 = arith.constant 0 : i32
    %c0_i32_0 = arith.constant 0 : i32
    return %arg0, %c0_i32 : i32, i32
  }
}

</mosaic_0001>

<llo_original>
// kernel: tpu_custom_call.1
$region0: #{tpu_custom_call.1}
  #allocation0 [shape = 'u32[]', space=smem, size = 0x4, offset = 0x4, fixed_abs, tag = 'smem constant byte address 0x4 - core index']
  #allocation1 [shape = 'u32[72,128]{1,0:T(1,128)}', space=vmem, size = 0x9000, scoped, tag = 'internal scratch']
  %s0 = inlined_call_operand.vmem [shape: f32[24,128], index: 0, kind: input, shape index: {}]
  %s1 = inlined_call_operand.vmem [shape: f32[128,64], index: 1, kind: input, shape index: {}]
  %s2 = inlined_call_operand.vmem [shape: f32[1,64], index: 2, kind: input, shape index: {}]
  %s3 = inlined_call_operand.vmem [shape: f32[64,32], index: 3, kind: input, shape index: {}]
  %s4 = inlined_call_operand.vmem [shape: f32[1,32], index: 4, kind: input, shape index: {}]
  %s5 = inlined_call_operand.vmem [shape: f32[32,16], index: 5, kind: input, shape index: {}]
  %s6 = inlined_call_operand.vmem [shape: f32[1,16], index: 6, kind: input, shape index: {}]
  %s7 = inlined_call_operand.vmem [shape: f32[16,128], index: 7, kind: input, shape index: {}]
  %s8 = inlined_call_operand.vmem [shape: f32[1,128], index: 8, kind: input, shape index: {}]
  %s9 = inlined_call_operand.hbm [shape: f32[24,128], index: 9, kind: output, shape index: {}]
  %s10 = sld [smem:[#allocation0]]
  $region46: #{tpu_custom_call.1} parent=0
    _
  %s12 = ssub.s32 1, %s10
  %s13 = scalar_select 0, %s12, %s10
  $region1: #{tpu_custom_call.1} parent=0
    #allocation2 [shape = 'u8[12288]{0}', space=vmem, size = 0x3000, scoped, tag = 'output window, operand 0, single buffered']
    #allocation3 [shape = 's32[1]{0}', space=sflag, size = 0x4, scoped, tag = 'scoped memory for tpu_custom_call.1']
    %14 = vsyncpa [#allocation3], 0
    // Predicated region
    $region2: #{tpu_custom_call.1} parent=1 // pred_check
      _
    $region3: #{tpu_custom_call.1} parent=1 // pred_check_branch
      %16 = sbr.rel (0) target = $region5
    $region4: #{tpu_custom_call.1} parent=1 // pred_region
      _
    $region5: #{tpu_custom_call.1} parent=1 // pred_fallthru
      _
    // Predicated region
    $region6: #{tpu_custom_call.1} parent=1 // pred_check
      _
    $region7: #{tpu_custom_call.1} parent=1 // pred_check_branch
      %18 = sbr.rel (0) target = $region9
    $region8: #{tpu_custom_call.1} parent=1 // pred_region
      _
    $region9: #{tpu_custom_call.1} parent=1 // pred_fallthru
      _
    // Predicated region
    $region10: #{tpu_custom_call.1} parent=1 // pred_check
      _
    $region11: #{tpu_custom_call.1} parent=1 // pred_check_branch
      %20 = sbr.rel (0) target = $region13
    $region12: #{tpu_custom_call.1} parent=1 // pred_region
      _
    $region13: #{tpu_custom_call.1} parent=1 // pred_fallthru
      _
    // Predicated region
    $region14: #{tpu_custom_call.1} parent=1 // pred_check
      _
    $region15: #{tpu_custom_call.1} parent=1 // pred_check_branch
      %22 = sbr.rel (0) target = $region17
    $region16: #{tpu_custom_call.1} parent=1 // pred_region
      _
    $region17: #{tpu_custom_call.1} parent=1 // pred_fallthru
      _
    // Predicated region
    $region18: #{tpu_custom_call.1} parent=1 // pred_check
      _
    $region19: #{tpu_custom_call.1} parent=1 // pred_check_branch
      %24 = sbr.rel (0) target = $region21
    $region20: #{tpu_custom_call.1} parent=1 // pred_region
      _
    $region21: #{tpu_custom_call.1} parent=1 // pred_fallthru
      _
    // Predicated region
    $region22: #{tpu_custom_call.1} parent=1 // pred_check
      _
    $region23: #{tpu_custom_call.1} parent=1 // pred_check_branch
      %26 = sbr.rel (0) target = $region25
    $region24: #{tpu_custom_call.1} parent=1 // pred_region
      _
    $region25: #{tpu_custom_call.1} parent=1 // pred_fallthru
      _
    // Predicated region
    $region26: #{tpu_custom_call.1} parent=1 // pred_check
      _
    $region27: #{tpu_custom_call.1} parent=1 // pred_check_branch
      %28 = sbr.rel (0) target = $region29
    $region28: #{tpu_custom_call.1} parent=1 // pred_region
      _
    $region29: #{tpu_custom_call.1} parent=1 // pred_fallthru
      _
    // Predicated region
    $region30: #{tpu_custom_call.1} parent=1 // pred_check
      _
    $region31: #{tpu_custom_call.1} parent=1 // pred_check_branch
      %30 = sbr.rel (0) target = $region33
    $region32: #{tpu_custom_call.1} parent=1 // pred_region
      _
    $region33: #{tpu_custom_call.1} parent=1 // pred_fallthru
      _
    // Predicated region
    $region34: #{tpu_custom_call.1} parent=1 // pred_check
      _
    $region35: #{tpu_custom_call.1} parent=1 // pred_check_branch
      %32 = sbr.rel (0) target = $region37
    $region36: #{tpu_custom_call.1} parent=1 // pred_region
      _
    $region37: #{tpu_custom_call.1} parent=1 // pred_fallthru
      _
    %v33 = vld [vmem:[%s0] sm:$0xff]
    %v34 = vld [vmem:[%s0 + $0x8] sm:$0xff]
    %v35 = vld [vmem:[%s0 + $0x10] sm:$0xff]
    %v36 = vld [vmem:[%s1] sm:$0xff]
    %v37 = vld [vmem:[%s1 + $0x8] sm:$0xff]
    %v38 = vld [vmem:[%s1 + $0x10] sm:$0xff]
    %v39 = vld [vmem:[%s1 + $0x18] sm:$0xff]
    %v40 = vld [vmem:[%s1 + $0x20] sm:$0xff]
    %v41 = vld [vmem:[%s1 + $0x28] sm:$0xff]
    %v42 = vld [vmem:[%s1 + $0x30] sm:$0xff]
    %v43 = vld [vmem:[%s1 + $0x38] sm:$0xff]
    %v44 = vld [vmem:[%s1 + $0x40] sm:$0xff]
    %v45 = vld [vmem:[%s1 + $0x48] sm:$0xff]
    %v46 = vld [vmem:[%s1 + $0x50] sm:$0xff]
    %v47 = vld [vmem:[%s1 + $0x58] sm:$0xff]
    %v48 = vld [vmem:[%s1 + $0x60] sm:$0xff]
    %v49 = vld [vmem:[%s1 + $0x68] sm:$0xff]
    %v50 = vld [vmem:[%s1 + $0x70] sm:$0xff]
    %v51 = vld [vmem:[%s1 + $0x78] sm:$0xff]
    %v52 = vld [vmem:[%s2] sm:$0x1]
    %v54 = vperm.slane %v52, 0
    %56 = vmatpush.msra.mxu0 %v51
    %57 = vmatpush.msra.mxu0 %v50
    %58 = vmatpush.msra.mxu0 %v49
    %59 = vmatpush.msra.mxu0 %v48
    %60 = vmatpush.msra.mxu0 %v47
    %61 = vmatpush.msra.mxu0 %v46
    %62 = vmatpush.msra.mxu0 %v45
    %63 = vmatpush.msra.mxu0 %v44
    %64 = vmatpush.msra.mxu0 %v43
    %65 = vmatpush.msra.mxu0 %v42
    %66 = vmatpush.msra.mxu0 %v41
    %67 = vmatpush.msra.mxu0 %v40
    %68 = vmatpush.msra.mxu0 %v39
    %69 = vmatpush.msra.mxu0 %v38
    %70 = vmatpush.msra.mxu0 %v37
    %71 = vmatpush.msra.mxu0 %v36
    %72 = vmatmul.f32.gmra.mxu0 %v33
    %v73 = vpop.f32.mrf.mxu0
    %v74 = vadd.f32 %v54, %v73
    %75 = vmatmul.f32.gmra.mxu0 %v34
    %v76 = vpop.f32.mrf.mxu0
    %v77 = vadd.f32 %v54, %v76
    %78 = vmatmul.f32.gmra.mxu0 %v35
    %v79 = vpop.f32.mrf.mxu0
    %v80 = vadd.f32 %v54, %v79
    %81 = vdwg.mxu0
    %v82 = vmax.f32 %v74, 0.0
    %v83 = vmax.f32 %v77, 0.0
    %v84 = vmax.f32 %v80, 0.0
    %v85 = vld [vmem:[%s3] sm:$0xff]
    %v86 = vld [vmem:[%s3 + $0x8] sm:$0xff]
    %v87 = vld [vmem:[%s3 + $0x10] sm:$0xff]
    %v88 = vld [vmem:[%s3 + $0x18] sm:$0xff]
    %v89 = vld [vmem:[%s3 + $0x20] sm:$0xff]
    %v90 = vld [vmem:[%s3 + $0x28] sm:$0xff]
    %v91 = vld [vmem:[%s3 + $0x30] sm:$0xff]
    %v92 = vld [vmem:[%s3 + $0x38] sm:$0xff]
    %v93 = vld [vmem:[%s4] sm:$0x1]
    %v95 = vperm.slane %v93, 0
    %vm97 = vcmask 523264
    %v99 = vsel %vm97, %v82, 0
    %v102 = vsel %vm97, %v83, 0
    %v105 = vsel %vm97, %v84, 0
    %107 = vmatpush.msra.mxu0 0.0
    %108 = vmatpush.msra.mxu0 0.0
    %109 = vmatpush.msra.mxu0 0.0
    %110 = vmatpush.msra.mxu0 0.0
    %111 = vmatpush.msra.mxu0 0.0
    %112 = vmatpush.msra.mxu0 0.0
    %113 = vmatpush.msra.mxu0 0.0
    %114 = vmatpush.msra.mxu0 0.0
    %115 = vmatpush.msra.mxu0 %v92
    %116 = vmatpush.msra.mxu0 %v91
    %117 = vmatpush.msra.mxu0 %v90
    %118 = vmatpush.msra.mxu0 %v89
    %119 = vmatpush.msra.mxu0 %v88
    %120 = vmatpush.msra.mxu0 %v87
    %121 = vmatpush.msra.mxu0 %v86
    %122 = vmatpush.msra.mxu0 %v85
    %123 = vmatmul.f32.gmra.mxu0 %v99
    %v124 = vpop.f32.mrf.mxu0
    %v125 = vadd.f32 %v95, %v124
    %126 = vmatmul.f32.gmra.mxu0 %v102
    %v127 = vpop.f32.mrf.mxu0
    %v128 = vadd.f32 %v95, %v127
    %129 = vmatmul.f32.gmra.mxu0 %v105
    %v130 = vpop.f32.mrf.mxu0
    %v131 = vadd.f32 %v95, %v130
    %132 = vdwg.mxu0
    %v133 = vmax.f32 %v125, 0.0
    %v134 = vmax.f32 %v128, 0.0
    %v135 = vmax.f32 %v131, 0.0
    %v136 = vld [vmem:[%s5] sm:$0xff]
    %v137 = vld [vmem:[%s5 + $0x8] sm:$0xff]
    %v138 = vld [vmem:[%s5 + $0x10] sm:$0xff]
    %v139 = vld [vmem:[%s5 + $0x18] sm:$0xff]
    %v140 = vld [vmem:[%s6] sm:$0x1]
    %v142 = vperm.slane %v140, 0
    %vm144 = vcmask 261120
    %v146 = vsel %vm144, %v133, 0
    %v149 = vsel %vm144, %v134, 0
    %v152 = vsel %vm144, %v135, 0
    %154 = vmatpush.msra.mxu0 0.0
    %155 = vmatpush.msra.mxu0 0.0
    %156 = vmatpush.msra.mxu0 0.0
    %157 = vmatpush.msra.mxu0 0.0
    %158 = vmatpush.msra.mxu0 0.0
    %159 = vmatpush.msra.mxu0 0.0
    %160 = vmatpush.msra.mxu0 0.0
    %161 = vmatpush.msra.mxu0 0.0
    %162 = vmatpush.msra.mxu0 0.0
    %163 = vmatpush.msra.mxu0 0.0
    %164 = vmatpush.msra.mxu0 0.0
    %165 = vmatpush.msra.mxu0 0.0
    %166 = vmatpush.msra.mxu0 %v139
    %167 = vmatpush.msra.mxu0 %v138
    %168 = vmatpush.msra.mxu0 %v137
    %169 = vmatpush.msra.mxu0 %v136
    %170 = vmatmul.f32.gmra.mxu0 %v146
    %v171 = vpop.f32.mrf.mxu0
    %v172 = vadd.f32 %v142, %v171
    %173 = vmatmul.f32.gmra.mxu0 %v149
    %v174 = vpop.f32.mrf.mxu0
    %v175 = vadd.f32 %v142, %v174
    %176 = vmatmul.f32.gmra.mxu0 %v152
    %v177 = vpop.f32.mrf.mxu0
    %v178 = vadd.f32 %v142, %v177
    %179 = vdwg.mxu0
    %v180 = vmax.f32 %v172, 0.0
    %v181 = vmax.f32 %v175, 0.0
    %v182 = vmax.f32 %v178, 0.0
    %v183 = vld [vmem:[%s7] sm:$0xff]
    %v184 = vld [vmem:[%s7 + $0x8] sm:$0xff]
    %v185 = vld [vmem:[%s8] sm:$0x1]
    %v187 = vperm.slane %v185, 0
    %vm189 = vcmask 130048
    %v191 = vsel %vm189, %v180, 0
    %v194 = vsel %vm189, %v181, 0
    %v197 = vsel %vm189, %v182, 0
    %199 = vmatpush.msra.mxu0 0.0
    %200 = vmatpush.msra.mxu0 0.0
    %201 = vmatpush.msra.mxu0 0.0
    %202 = vmatpush.msra.mxu0 0.0
    %203 = vmatpush.msra.mxu0 0.0
    %204 = vmatpush.msra.mxu0 0.0
    %205 = vmatpush.msra.mxu0 0.0
    %206 = vmatpush.msra.mxu0 0.0
    %207 = vmatpush.msra.mxu0 0.0
    %208 = vmatpush.msra.mxu0 0.0
    %209 = vmatpush.msra.mxu0 0.0
    %210 = vmatpush.msra.mxu0 0.0
    %211 = vmatpush.msra.mxu0 0.0
    %212 = vmatpush.msra.mxu0 0.0
    %213 = vmatpush.msra.mxu0 %v184
    %214 = vmatpush.msra.mxu0 %v183
    %215 = vmatmul.f32.gmra.mxu0 %v191
    %v216 = vpop.f32.mrf.mxu0
    %v217 = vadd.f32 %v187, %v216
    %218 = vmatmul.f32.gmra.mxu0 %v194
    %v219 = vpop.f32.mrf.mxu0
    %v220 = vadd.f32 %v187, %v219
    %221 = vmatmul.f32.gmra.mxu0 %v197
    %v222 = vpop.f32.mrf.mxu0
    %v223 = vadd.f32 %v187, %v222
    %224 = vdwg.mxu0
    %225 = vst [vmem:[#allocation2] sm:$0xff] %v217
    %226 = vst [vmem:[#allocation2 + $0x8] sm:$0xff] %v220
    %227 = vst [vmem:[#allocation2 + $0x10] sm:$0xff] %v223
    // Predicated region
    $region38: #{tpu_custom_call.1} parent=1 // pred_check
      _
    $region39: #{tpu_custom_call.1} parent=1 // pred_check_branch
      %229 = sbr.rel (0) target = $region41
    $region40: #{tpu_custom_call.1} parent=1 // pred_region
      %231 = vsyncadd [#allocation3], 0
      %s232 = sshll.u32 [#allocation2], 4
      %s233 = int_to_ptr.vmem [resolvable:$true] %s232
      %s234 = sshll.u32 %s9, 4
      %s235 = int_to_ptr.hbm [resolvable:$true] %s234
      %240 = dma.vmem_to_hbm [thread:$0]  %s233, 384, %s235, [#allocation3], 128, 128, 8
    $region41: #{tpu_custom_call.1} parent=1 // pred_fallthru
      _
    // Predicated region
    $region42: #{tpu_custom_call.1} parent=1 // pred_check
      _
    $region43: #{tpu_custom_call.1} parent=1 // pred_check_branch
      %242 = sbr.rel (0) target = $region45
    $region44: #{tpu_custom_call.1} parent=1 // pred_region
      %244 = dma.done [#allocation3], 384
    $region45: #{tpu_custom_call.1} parent=1 // pred_fallthru
      _
    %245 = vsyncpa [#allocation3], 1

</llo_original>
